<compile_context>
chip_gen: v5e
topology: v5e:2x2
jax: 0.10.0
libtpu: 0.0.40
codegen_flags: <defaults>
</compile_context>

<pallas_src>
import jax
import jax.numpy as jnp
from jax.experimental import pallas as pl
from jax.experimental.pallas import tpu as pltpu

LANE = 128


def _round_up(x, m):
    return ((x + m - 1) // m) * m


def _vmem_block_bytes(shape, dtype):
    """VMEM footprint of one pipeline block, including (sublane, lane) padding."""
    itemsize = jnp.dtype(dtype).itemsize
    sublane = 8 * (4 // itemsize) if itemsize in (1, 2, 4) else 8
    r, c = shape
    return _round_up(r, sublane) * _round_up(c, LANE) * itemsize


def _vmem_capacity_bytes():
    try:
        return int(pltpu.get_tpu_info().vmem_capacity_bytes)
    except Exception:
        return 64 << 20  # conservative fallback (v7x per-TensorCore size)


def _prediction_head_kernel(x_ref, w1_ref, b1_ref, w2_ref, b2_ref, w3_ref, b3_ref,
                            ret_ref, conf_ref):
    # regression: Linear(dim_input -> dim_input // 2) + ReLU (f32 accumulation)
    x = x_ref[...].astype(w1_ref.dtype)          # cast in-kernel: no wrapper pass over x
    h = jnp.dot(x, w1_ref[...], preferred_element_type=jnp.float32) + b1_ref[...]
    h = jnp.maximum(h, 0.0).astype(w2_ref.dtype)
    # out_layer
    ret = jnp.dot(h, w2_ref[...], preferred_element_type=jnp.float32) + b2_ref[...]
    ret_ref[...] = ret.astype(ret_ref.dtype)
    # confi_layer -> sigmoid, only on the single confidence column
    logit = jnp.dot(h, w3_ref[...], preferred_element_type=jnp.float32) + b3_ref[...]
    conf_ref[...] = jax.nn.sigmoid(logit).astype(conf_ref.dtype)


def prediction_head(x, params, *, tile_b=512):
    """x: [B, dim_input] f32. params: prepare_params() output (pre-cast weights).

    Returns (ret [B, dim_output] f32, confidence [B, 1] f32).
    """
    B, dim_input = x.shape
    w1, b1 = params["w1"], params["b1"]          # [dim_input, hidden], [1, hidden]
    w2, b2 = params["w2"], params["b2"]          # [hidden, dim_output], [1, dim_output]
    w3, b3 = params["w3"], params["b3"]          # [hidden, 1], [1, 1]
    hidden = w1.shape[1]
    dim_output = w2.shape[1]
    assert w1.shape[0] == dim_input and w3.shape == (hidden, 1)

    # ---- batch tiling: x is DMA'd as f32 (cast happens in-kernel) ----------
    tile_b = min(tile_b, _round_up(B, 8))
    assert tile_b % 8 == 0, "tile_b must be a multiple of 8 (f32 sublanes)"
    grid = (pl.cdiv(B, tile_b),)   # partial edge block handled by Pallas masking

    # ---- VMEM budget: default pipeline double-buffers every block ----------
    vmem_need = 2 * (
        _vmem_block_bytes((tile_b, dim_input), x.dtype)
        + _vmem_block_bytes((dim_input, hidden), w1.dtype)
        + _vmem_block_bytes((1, hidden), b1.dtype)
        + _vmem_block_bytes((hidden, dim_output), w2.dtype)
        + _vmem_block_bytes((1, dim_output), b2.dtype)
        + _vmem_block_bytes((hidden, 1), w3.dtype)
        + _vmem_block_bytes((1, 1), b3.dtype)
        + _vmem_block_bytes((tile_b, dim_output), jnp.float32)
        + _vmem_block_bytes((tile_b, 1), jnp.float32)
    )
    cap = _vmem_capacity_bytes()
    vmem_limit = int(min(max(vmem_need + (4 << 20), 16 << 20), (cap * 4) // 5))

    out_shape = (
        jax.ShapeDtypeStruct((B, dim_output), jnp.float32),
        jax.ShapeDtypeStruct((B, 1), jnp.float32),
    )
    ret, conf = pl.pallas_call(
        _prediction_head_kernel,
        out_shape=out_shape,
        grid_spec=pltpu.PrefetchScalarGridSpec(
            num_scalar_prefetch=0,
            grid=grid,
            in_specs=[
                pl.BlockSpec((tile_b, dim_input), lambda i: (i, 0)),   # x tile (f32)
                pl.BlockSpec((dim_input, hidden), lambda i: (0, 0)),   # w1 (grid-invariant)
                pl.BlockSpec((1, hidden), lambda i: (0, 0)),           # b1
                pl.BlockSpec((hidden, dim_output), lambda i: (0, 0)),  # w2
                pl.BlockSpec((1, dim_output), lambda i: (0, 0)),       # b2
                pl.BlockSpec((hidden, 1), lambda i: (0, 0)),           # w3
                pl.BlockSpec((1, 1), lambda i: (0, 0)),                # b3
            ],
            out_specs=[
                pl.BlockSpec((tile_b, dim_output), lambda i: (i, 0)),  # ret (dense)
                pl.BlockSpec((tile_b, 1), lambda i: (i, 0)),           # confidence
            ],
        ),
        compiler_params=pltpu.CompilerParams(
            dimension_semantics=("parallel",),
            vmem_limit_bytes=vmem_limit,
        ),
    )(x, w1, b1, w2, b2, w3, b3)
    return ret, conf


def prepare_params(params, compute_dtype=jnp.bfloat16):
    """One-time packing: weights cast to the MXU compute dtype, biases stay f32."""
    return {
        "w1": params["w1"].astype(compute_dtype),
        "b1": params["b1"].astype(jnp.float32),
        "w2": params["w2"].astype(compute_dtype),
        "b2": params["b2"].astype(jnp.float32),
        "w3": params["w3"].astype(compute_dtype),
        "b3": params["b3"].astype(jnp.float32),
    }


def init_params(key, dim_input, dim_output):
    """Deterministic synthetic init; weights stored pre-transposed as [in, out]."""
    hidden = dim_input // 2
    k1, k2, k3, k4, k5, k6 = jax.random.split(key, 6)
    s1 = 1.0 / jnp.sqrt(dim_input)
    s2 = 1.0 / jnp.sqrt(hidden)
    return {
        "w1": jax.random.uniform(k1, (dim_input, hidden), jnp.float32, -s1, s1),
        "b1": jax.random.uniform(k2, (1, hidden), jnp.float32, -s1, s1),
        "w2": jax.random.uniform(k3, (hidden, dim_output), jnp.float32, -s2, s2),
        "b2": jax.random.uniform(k4, (1, dim_output), jnp.float32, -s2, s2),
        "w3": jax.random.uniform(k5, (hidden, 1), jnp.float32, -s2, s2),
        "b3": jax.random.uniform(k6, (1, 1), jnp.float32, -s2, s2),
    }


def reference_forward_f32(x, p):
    h = jnp.maximum(x @ p["w1"] + p["b1"], 0.0)
    ret = h @ p["w2"] + p["b2"]
    conf = jax.nn.sigmoid(h @ p["w3"] + p["b3"])
    return ret, conf


def reference_forward_bf16(x, p):
    """Emulates the kernel numerics (bf16 operands, f32 accumulation)."""
    xb = x.astype(jnp.bfloat16)
    h = jnp.dot(xb, p["w1"].astype(jnp.bfloat16),
                preferred_element_type=jnp.float32) + p["b1"]
    h = jnp.maximum(h, 0.0).astype(jnp.bfloat16)
    ret = jnp.dot(h, p["w2"].astype(jnp.bfloat16),
                  preferred_element_type=jnp.float32) + p["b2"]
    logit = jnp.dot(h, p["w3"].astype(jnp.bfloat16),
                    preferred_element_type=jnp.float32) + p["b3"]
    return ret, jax.nn.sigmoid(logit)


if __name__ == "__main__":
    # Small shapes consistent with the module: dim_input=32 -> hidden=16, dim_output=8.
    # (confidence=True path; the confidence=False branch in the PyTorch source,
    #  torch.zeros_like([ret.shape[0], 1]), is not valid code, so the confidence
    #  head is implemented.)
    DIM_IN, DIM_OUT = 32, 8
    key = jax.random.PRNGKey(0)
    kx, kp = jax.random.split(key)
    raw = init_params(kp, DIM_IN, DIM_OUT)
    prepared = prepare_params(raw)   # one-time weight cast, not per forward call

    # (B, tile_b): 2nd case exercises the masked partial edge block,
    # 3rd exercises a multi-step grid with a ragged final block.
    for B, tb in ((8, 512), (10, 512), (20, 8)):
        x = jax.random.normal(jax.random.fold_in(kx, B), (B, DIM_IN), jnp.float32)

        ret, conf = prediction_head(x, prepared, tile_b=tb)
        jax.block_until_ready((ret, conf))
        assert ret.shape == (B, DIM_OUT) and conf.shape == (B, 1)

        # tight check against a reference mirroring the kernel's bf16 numerics
        ret_e, conf_e = reference_forward_bf16(x, raw)
        assert jnp.allclose(ret, ret_e, atol=1e-3, rtol=1e-3)
        assert jnp.allclose(conf, conf_e, atol=1e-3, rtol=1e-3)

        # loose check against the pure-f32 PyTorch-equivalent reference
        ret_f, conf_f = reference_forward_f32(x, raw)
        assert jnp.allclose(ret, ret_f, atol=5e-2, rtol=5e-2)
        assert jnp.allclose(conf, conf_f, atol=5e-2, rtol=5e-2)

    print("KERNEL_OK")
</pallas_src>

<mosaic_0001>
module attributes {stable_mosaic.version = 11 : i64} {
  func.func @_prediction_head_kernel(%arg0: i32, %arg1: memref<8x32xf32, #tpu.memory_space<vmem>>, %arg2: memref<32x16xbf16, #tpu.memory_space<vmem>>, %arg3: memref<1x16xf32, #tpu.memory_space<vmem>>, %arg4: memref<16x8xbf16, #tpu.memory_space<vmem>>, %arg5: memref<1x8xf32, #tpu.memory_space<vmem>>, %arg6: memref<16x1xbf16, #tpu.memory_space<vmem>>, %arg7: memref<1x1xf32, #tpu.memory_space<vmem>>, %arg8: memref<8x8xf32, #tpu.memory_space<vmem>>, %arg9: memref<8x1xf32, #tpu.memory_space<vmem>>) attributes {dimension_semantics = [#tpu.dimension_semantics<parallel>], iteration_bounds = array<i64: 1>, scalar_prefetch = 0 : i64, scratch_operands = 0 : i64, tpu.core_type = #tpu.core_type<tc>, window_params = [{transform_indices = @transform_0, window_bounds = array<i64: 8, 32>}, {pipeline_mode = #tpu.pipeline_mode<synchronous>, transform_indices = @transform_1, window_bounds = array<i64: 32, 16>}, {pipeline_mode = #tpu.pipeline_mode<synchronous>, transform_indices = @transform_2, window_bounds = array<i64: 1, 16>}, {pipeline_mode = #tpu.pipeline_mode<synchronous>, transform_indices = @transform_3, window_bounds = array<i64: 16, 8>}, {pipeline_mode = #tpu.pipeline_mode<synchronous>, transform_indices = @transform_4, window_bounds = array<i64: 1, 8>}, {pipeline_mode = #tpu.pipeline_mode<synchronous>, transform_indices = @transform_5, window_bounds = array<i64: 16, 1>}, {pipeline_mode = #tpu.pipeline_mode<synchronous>, transform_indices = @transform_6, window_bounds = array<i64: 1, 1>}, {transform_indices = @transform_7, window_bounds = array<i64: 8, 8>}, {transform_indices = @transform_8, window_bounds = array<i64: 8, 1>}]} {
    %c0 = arith.constant 0 : index
    %c0_0 = arith.constant 0 : index
    %0 = vector.load %arg1[%c0, %c0_0] : memref<8x32xf32, #tpu.memory_space<vmem>>, vector<8x32xf32>
    %1 = arith.truncf %0 : vector<8x32xf32> to vector<8x32xbf16>
    %c0_1 = arith.constant 0 : index
    %c0_2 = arith.constant 0 : index
    %2 = vector.load %arg2[%c0_1, %c0_2] : memref<32x16xbf16, #tpu.memory_space<vmem>>, vector<32x16xbf16>
    %cst = arith.constant dense<0.000000e+00> : vector<8x16xf32>
    %3 = tpu.matmul %1, %2, %cst {dimension_numbers = #tpu.dot_dimension_numbers<[1], [0], [0], [1], [0, 0, 1, 1], [], []>} : vector<8x32xbf16>, vector<32x16xbf16>, vector<8x16xf32> -> vector<8x16xf32>
    %c0_3 = arith.constant 0 : index
    %c0_4 = arith.constant 0 : index
    %4 = vector.load %arg3[%c0_3, %c0_4] : memref<1x16xf32, #tpu.memory_space<vmem>>, vector<1x16xf32>
    %5 = vector.broadcast %4 : vector<1x16xf32> to vector<8x16xf32>
    %6 = arith.addf %3, %5 : vector<8x16xf32>
    %cst_5 = arith.constant 0.000000e+00 : f32
    %7 = vector.broadcast %cst_5 : f32 to vector<8x16xf32>
    %8 = arith.maximumf %6, %7 : vector<8x16xf32>
    %9 = arith.truncf %8 : vector<8x16xf32> to vector<8x16xbf16>
    %c0_6 = arith.constant 0 : index
    %c0_7 = arith.constant 0 : index
    %10 = vector.load %arg4[%c0_6, %c0_7] : memref<16x8xbf16, #tpu.memory_space<vmem>>, vector<16x8xbf16>
    %cst_8 = arith.constant dense<0.000000e+00> : vector<8x8xf32>
    %11 = tpu.matmul %9, %10, %cst_8 {dimension_numbers = #tpu.dot_dimension_numbers<[1], [0], [0], [1], [0, 0, 1, 1], [], []>} : vector<8x16xbf16>, vector<16x8xbf16>, vector<8x8xf32> -> vector<8x8xf32>
    %c0_9 = arith.constant 0 : index
    %c0_10 = arith.constant 0 : index
    %12 = vector.load %arg5[%c0_9, %c0_10] : memref<1x8xf32, #tpu.memory_space<vmem>>, vector<1x8xf32>
    %13 = vector.broadcast %12 : vector<1x8xf32> to vector<8x8xf32>
    %14 = arith.addf %11, %13 : vector<8x8xf32>
    %c0_11 = arith.constant 0 : index
    %c0_12 = arith.constant 0 : index
    %15 = vector.load %arg8[%c0_11, %c0_12] : memref<8x8xf32, #tpu.memory_space<vmem>>, vector<8x8xf32>
    tpu.vector_store %arg8[%c0_11, %c0_12], %14 {strides = array<i32>} : memref<8x8xf32, #tpu.memory_space<vmem>>, vector<8x8xf32>,
    %c0_13 = arith.constant 0 : index
    %c0_14 = arith.constant 0 : index
    %16 = vector.load %arg6[%c0_13, %c0_14] : memref<16x1xbf16, #tpu.memory_space<vmem>>, vector<16x1xbf16>
    %cst_15 = arith.constant dense<0.000000e+00> : vector<8x1xf32>
    %17 = tpu.matmul %9, %16, %cst_15 {dimension_numbers = #tpu.dot_dimension_numbers<[1], [0], [0], [1], [0, 0, 1, 1], [], []>} : vector<8x16xbf16>, vector<16x1xbf16>, vector<8x1xf32> -> vector<8x1xf32>
    %c0_16 = arith.constant 0 : index
    %c0_17 = arith.constant 0 : index
    %18 = vector.load %arg7[%c0_16, %c0_17] : memref<1x1xf32, #tpu.memory_space<vmem>>, vector<1x1xf32>
    %19 = vector.broadcast %18 : vector<1x1xf32> to vector<8x1xf32>
    %20 = arith.addf %17, %19 : vector<8x1xf32>
    %21 = arith.negf %20 : vector<8x1xf32>
    %22 = math.exp %21 : vector<8x1xf32>
    %cst_18 = arith.constant 1.000000e+00 : f32
    %23 = vector.broadcast %cst_18 : f32 to vector<8x1xf32>
    %24 = arith.addf %23, %22 : vector<8x1xf32>
    %25 = arith.divf %23, %24 : vector<8x1xf32>
    %c0_19 = arith.constant 0 : index
    %c0_20 = arith.constant 0 : index
    %26 = vector.load %arg9[%c0_19, %c0_20] : memref<8x1xf32, #tpu.memory_space<vmem>>, vector<8x1xf32>
    tpu.vector_store %arg9[%c0_19, %c0_20], %25 {strides = array<i32>} : memref<8x1xf32, #tpu.memory_space<vmem>>, vector<8x1xf32>,
    return
  }
  func.func @transform_0(%arg0: i32) -> (i32, i32) {
    %c0_i32 = arith.constant 0 : i32
    %c0_i32_0 = arith.constant 0 : i32
    return %arg0, %c0_i32 : i32, i32
  }
  func.func @transform_1(%arg0: i32) -> (i32, i32) {
    %c0_i32 = arith.constant 0 : i32
    %c0_i32_0 = arith.constant 0 : i32
    %c0_i32_1 = arith.constant 0 : i32
    return %c0_i32, %c0_i32_0 : i32, i32
  }
  func.func @transform_2(%arg0: i32) -> (i32, i32) {
    %c0_i32 = arith.constant 0 : i32
    %c0_i32_0 = arith.constant 0 : i32
    %c0_i32_1 = arith.constant 0 : i32
    return %c0_i32, %c0_i32_0 : i32, i32
  }
  func.func @transform_3(%arg0: i32) -> (i32, i32) {
    %c0_i32 = arith.constant 0 : i32
    %c0_i32_0 = arith.constant 0 : i32
    %c0_i32_1 = arith.constant 0 : i32
    return %c0_i32, %c0_i32_0 : i32, i32
  }
  func.func @transform_4(%arg0: i32) -> (i32, i32) {
    %c0_i32 = arith.constant 0 : i32
    %c0_i32_0 = arith.constant 0 : i32
    %c0_i32_1 = arith.constant 0 : i32
    return %c0_i32, %c0_i32_0 : i32, i32
  }
  func.func @transform_5(%arg0: i32) -> (i32, i32) {
    %c0_i32 = arith.constant 0 : i32
    %c0_i32_0 = arith.constant 0 : i32
    %c0_i32_1 = arith.constant 0 : i32
    return %c0_i32, %c0_i32_0 : i32, i32
  }
  func.func @transform_6(%arg0: i32) -> (i32, i32) {
    %c0_i32 = arith.constant 0 : i32
    %c0_i32_0 = arith.constant 0 : i32
    %c0_i32_1 = arith.constant 0 : i32
    return %c0_i32, %c0_i32_0 : i32, i32
  }
  func.func @transform_7(%arg0: i32) -> (i32, i32) {
    %c0_i32 = arith.constant 0 : i32
    %c0_i32_0 = arith.constant 0 : i32
    return %arg0, %c0_i32 : i32, i32
  }
  func.func @transform_8(%arg0: i32) -> (i32, i32) {
    %c0_i32 = arith.constant 0 : i32
    %c0_i32_0 = arith.constant 0 : i32
    return %arg0, %c0_i32 : i32, i32
  }
}

</mosaic_0001>

<llo_original>
// kernel: tpu_custom_call.1
$region0: #{tpu_custom_call.1}
  #allocation0 [shape = 'u32[]', space=smem, size = 0x4, offset = 0x4, fixed_abs, tag = 'smem constant byte address 0x4 - core index']
  #allocation1 [shape = 'u32[72,128]{1,0:T(1,128)}', space=vmem, size = 0x9000, scoped, tag = 'internal scratch']
  #allocation2 [shape = 'f32[1,1]{1,0:T(1,128)S(1)}', space=vmem, size = 0x200, scoped, tag = 'scoped memory for tpu_custom_call.1']
  %s0 = inlined_call_operand.vmem [shape: f32[8,32], index: 0, kind: input, shape index: {}]
  %s1 = inlined_call_operand.vmem [shape: bf16[32,16], index: 1, kind: input, shape index: {}]
  %s2 = inlined_call_operand.vmem [shape: f32[1,16], index: 2, kind: input, shape index: {}]
  %s3 = inlined_call_operand.vmem [shape: bf16[16,8], index: 3, kind: input, shape index: {}]
  %s4 = inlined_call_operand.vmem [shape: f32[1,8], index: 4, kind: input, shape index: {}]
  %s5 = inlined_call_operand.vmem [shape: bf16[16,1], index: 5, kind: input, shape index: {}]
  %s6 = inlined_call_operand.<no memory space> [shape: f32[1,1], index: 6, kind: input, shape index: {}]
  %s7 = inlined_call_operand.hbm [shape: f32[8,8], index: 7, kind: output, shape index: {0}]
  %s8 = inlined_call_operand.vmem [shape: f32[8,1], index: 8, kind: output, shape index: {1}]
  %9 = xla_tuple %s7, %s8
  %s10 = sld [smem:[#allocation0]]
  $region46: #{tpu_custom_call.1} parent=0
    _
  %s12 = ssub.s32 1, %s10
  %s13 = scalar_select 0, %s12, %s10
  %v14 = vstv %s6
  %15 = vst [vmem:[#allocation2] sm:$0x1] %v14
  $region1: #{tpu_custom_call.1} parent=0
    #allocation3 [shape = 'u8[4096]{0}', space=vmem, size = 0x1000, scoped, tag = 'output window, operand 0, single buffered']
    #allocation4 [shape = 's32[1]{0}', space=sflag, size = 0x4, scoped, tag = 'scoped memory for tpu_custom_call.1']
    %16 = vsyncpa [#allocation4], 0
    // Predicated region
    $region2: #{tpu_custom_call.1} parent=1 // pred_check
      _
    $region3: #{tpu_custom_call.1} parent=1 // pred_check_branch
      %18 = sbr.rel (0) target = $region5
    $region4: #{tpu_custom_call.1} parent=1 // pred_region
      _
    $region5: #{tpu_custom_call.1} parent=1 // pred_fallthru
      _
    // Predicated region
    $region6: #{tpu_custom_call.1} parent=1 // pred_check
      _
    $region7: #{tpu_custom_call.1} parent=1 // pred_check_branch
      %20 = sbr.rel (0) target = $region9
    $region8: #{tpu_custom_call.1} parent=1 // pred_region
      _
    $region9: #{tpu_custom_call.1} parent=1 // pred_fallthru
      _
    // Predicated region
    $region10: #{tpu_custom_call.1} parent=1 // pred_check
      _
    $region11: #{tpu_custom_call.1} parent=1 // pred_check_branch
      %22 = sbr.rel (0) target = $region13
    $region12: #{tpu_custom_call.1} parent=1 // pred_region
      _
    $region13: #{tpu_custom_call.1} parent=1 // pred_fallthru
      _
    // Predicated region
    $region14: #{tpu_custom_call.1} parent=1 // pred_check
      _
    $region15: #{tpu_custom_call.1} parent=1 // pred_check_branch
      %24 = sbr.rel (0) target = $region17
    $region16: #{tpu_custom_call.1} parent=1 // pred_region
      _
    $region17: #{tpu_custom_call.1} parent=1 // pred_fallthru
      _
    // Predicated region
    $region18: #{tpu_custom_call.1} parent=1 // pred_check
      _
    $region19: #{tpu_custom_call.1} parent=1 // pred_check_branch
      %26 = sbr.rel (0) target = $region21
    $region20: #{tpu_custom_call.1} parent=1 // pred_region
      _
    $region21: #{tpu_custom_call.1} parent=1 // pred_fallthru
      _
    // Predicated region
    $region22: #{tpu_custom_call.1} parent=1 // pred_check
      _
    $region23: #{tpu_custom_call.1} parent=1 // pred_check_branch
      %28 = sbr.rel (0) target = $region25
    $region24: #{tpu_custom_call.1} parent=1 // pred_region
      _
    $region25: #{tpu_custom_call.1} parent=1 // pred_fallthru
      _
    // Predicated region
    $region26: #{tpu_custom_call.1} parent=1 // pred_check
      _
    $region27: #{tpu_custom_call.1} parent=1 // pred_check_branch
      %30 = sbr.rel (0) target = $region29
    $region28: #{tpu_custom_call.1} parent=1 // pred_region
      _
    $region29: #{tpu_custom_call.1} parent=1 // pred_fallthru
      _
    %v32 = vld [vmem:[%s0] sm:$0xff]
    %v33 = vpack.c.bf16 %v32, %v32
    %v34 = vld [vmem:[%s1] sm:$0xf]
    %v35 = vld [vmem:[%s1 + $0x4] sm:$0xf]
    %v36 = vld [vmem:[%s1 + $0x8] sm:$0xf]
    %v37 = vld [vmem:[%s1 + $0xc] sm:$0xf]
    %v38 = vld [vmem:[%s2] sm:$0x1]
    %v40 = vperm.slane %v38, 0
    %v46 = vunpack.c.l.b16 %v34
    %v47 = vunpack.c.l.b16 %v35
    %v48 = vunpack.c.l.b16 %v36
    %v49 = vunpack.c.l.b16 %v37
    %v50 = vpack.c.b16 %v47, %v46
    %v51 = vpack.c.b16 %v49, %v48
    %vm54 = vcmask 261120
    %v56 = vsel %vm54, %v33, 0
    %58 = vmatpush.bf16.msra.mxu0 0
    %59 = vmatpush.bf16.msra.mxu0 0
    %60 = vmatpush.bf16.msra.mxu0 0
    %61 = vmatpush.bf16.msra.mxu0 0
    %62 = vmatpush.bf16.msra.mxu0 0
    %63 = vmatpush.bf16.msra.mxu0 0
    %64 = vmatpush.bf16.msra.mxu0 %v51
    %65 = vmatpush.bf16.msra.mxu0 %v50
    %66 = vmatmul.bf16.gmra.mxu0 %v56
    %v67 = vpop.f32.mrf.mxu0
    %v68 = vadd.f32 %v40, %v67
    %v69 = vpop.f32.mrf.mxu0
    %70 = vdwg.mxu0
    %v71 = vmax.f32 %v68, 0.0
    %v72 = vpack.c.bf16 %v71, %v71
    %v73 = vld [vmem:[%s3] sm:$0xf]
    %v74 = vld [vmem:[%s3 + $0x4] sm:$0xf]
    %v75 = vld [vmem:[%s4] sm:$0x1]
    %v77 = vperm.slane %v75, 0
    %v81 = vunpack.c.l.b16 %v73
    %v82 = vunpack.c.l.b16 %v74
    %v83 = vpack.c.b16 %v82, %v81
    %vm85 = vcmask 130048
    %v87 = vsel %vm85, %v72, 0
    %89 = vmatpush.bf16.msra.mxu0 0
    %90 = vmatpush.bf16.msra.mxu0 0
    %91 = vmatpush.bf16.msra.mxu0 0
    %92 = vmatpush.bf16.msra.mxu0 0
    %93 = vmatpush.bf16.msra.mxu0 0
    %94 = vmatpush.bf16.msra.mxu0 0
    %95 = vmatpush.bf16.msra.mxu0 0
    %96 = vmatpush.bf16.msra.mxu0 %v83
    %97 = vmatmul.bf16.gmra.mxu0 %v87
    %v98 = vpop.f32.mrf.mxu0
    %v99 = vadd.f32 %v77, %v98
    %v100 = vpop.f32.mrf.mxu0
    %101 = vdwg.mxu0
    %vm102 = vcmask 64512
    %103 = vst.msk [vmem:[#allocation3] sm:$0xff] %vm102, %v99
    %v104 = vld [vmem:[%s5] sm:$0xf]
    %v105 = vld [vmem:[%s5 + $0x4] sm:$0xf]
    %v106 = vld [vmem:[#allocation2] sm:$0x1]
    %v108 = vperm.slane %v106, 0
    %v112 = vunpack.c.l.b16 %v104
    %v113 = vunpack.c.l.b16 %v105
    %v114 = vpack.c.b16 %v113, %v112
    %116 = vmatpush.bf16.msra.mxu0 0
    %117 = vmatpush.bf16.msra.mxu0 0
    %118 = vmatpush.bf16.msra.mxu0 0
    %119 = vmatpush.bf16.msra.mxu0 0
    %120 = vmatpush.bf16.msra.mxu0 0
    %121 = vmatpush.bf16.msra.mxu0 0
    %122 = vmatpush.bf16.msra.mxu0 0
    %123 = vmatpush.bf16.msra.mxu0 %v114
    %124 = vmatmul.bf16.gmra.mxu0 %v87
    %v125 = vpop.f32.mrf.mxu0
    %v126 = vadd.f32 %v108, %v125
    %v127 = vpop.f32.mrf.mxu0
    %128 = vdwg.mxu0
    %v129 = vxor.u32 %v126, 2147483648
    %v130 = vmul.f32 %v129, 1.442695
    %v131 = vpow.pop %v130
    %v132 = vadd.f32 %v131, 1.0
    %v133 = vrcp.pop %v132
    %v134 = vmul.f32 %v132, %v133
    %v135 = vsub.f32 1.0, %v134
    %v136 = vmul.f32 %v133, %v135
    %v137 = vadd.f32 %v133, %v136
    %vm138 = vweird.f32 %v132
    %vm139 = vweird.f32 %v133
    %vm140 = vmor %vm138, %vm139
    %v141 = vsel %vm140, %v133, %v137
    %v142 = vand.u32 2147483647, %v132
    %vm143 = vcmp.eq.f32.partialorder %v142, 8.507059e+37
    %v144 = vand.u32 %v132, 2147483648
    %v145 = vor.u32 1.1754944e-38, %v144
    %v146 = vsel %vm143, %v145, %v141
    %v147 = vmul.f32 1.0, %v146
    %vm148 = vcmask 7168
    %149 = vst.msk [vmem:[%s8] sm:$0xff] %vm148, %v147
    // Predicated region
    $region30: #{tpu_custom_call.1} parent=1 // pred_check
      _
    $region31: #{tpu_custom_call.1} parent=1 // pred_check_branch
      %151 = sbr.rel (0) target = $region33
    $region32: #{tpu_custom_call.1} parent=1 // pred_region
      %153 = vsyncadd [#allocation4], 0
      %s155 = sshll.u32 [#allocation3], 4
      %s156 = int_to_ptr.vmem [resolvable:$true] %s155
      %s157 = sshll.u32 %s7, 4
      %s158 = int_to_ptr.hbm [resolvable:$true] %s157
      %160 = dma.vmem_to_hbm [thread:$0]  %s156, 128, %s158, [#allocation4]
    $region33: #{tpu_custom_call.1} parent=1 // pred_fallthru
      _
    // Predicated region
    $region34: #{tpu_custom_call.1} parent=1 // pred_check
      _
    $region35: #{tpu_custom_call.1} parent=1 // pred_check_branch
      %162 = sbr.rel (0) target = $region37
    $region36: #{tpu_custom_call.1} parent=1 // pred_region
      _
    $region37: #{tpu_custom_call.1} parent=1 // pred_fallthru
      _
    // Predicated region
    $region38: #{tpu_custom_call.1} parent=1 // pred_check
      _
    $region39: #{tpu_custom_call.1} parent=1 // pred_check_branch
      %164 = sbr.rel (0) target = $region41
    $region40: #{tpu_custom_call.1} parent=1 // pred_region
      %166 = dma.done [#allocation4], 128
    $region41: #{tpu_custom_call.1} parent=1 // pred_fallthru
      _
    // Predicated region
    $region42: #{tpu_custom_call.1} parent=1 // pred_check
      _
    $region43: #{tpu_custom_call.1} parent=1 // pred_check_branch
      %168 = sbr.rel (0) target = $region45
    $region44: #{tpu_custom_call.1} parent=1 // pred_region
      _
    $region45: #{tpu_custom_call.1} parent=1 // pred_fallthru
      _
    %169 = vsyncpa [#allocation4], 1

</llo_original>
